<compile_context>
chip_gen: v6e
topology: v6e:2x2x1
jax: 0.10.0
libtpu: 0.0.40
codegen_flags: <defaults>
</compile_context>

<pallas_src>
import functools

import jax
import jax.numpy as jnp
from jax.experimental import pallas as pl
from jax.experimental.pallas import tpu as pltpu


def _round_up(n: int, m: int) -> int:
    return ((n + m - 1) // m) * m


# ---------------------------------------------------------------------------
# Feature detection / hardware info
# ---------------------------------------------------------------------------

def _probe_copy_kernel(x_ref, o_ref):
    o_ref[...] = x_ref[...]


@functools.lru_cache(maxsize=None)
def _buffered_supported() -> bool:
    """Detect pipeline_mode=pl.Buffered(1) by actually lowering + running a
    tiny probe once (try/except around the real kernels would not fire under
    jit, per review)."""
    if not hasattr(pl, "Buffered"):
        return False
    try:
        spec = pl.BlockSpec((8, 128), lambda i: (0, 0),
                            pipeline_mode=pl.Buffered(1))
        out = pl.pallas_call(
            _probe_copy_kernel,
            out_shape=jax.ShapeDtypeStruct((8, 128), jnp.float32),
            grid=(1,),
            in_specs=[spec],
            out_specs=pl.BlockSpec((8, 128), lambda i: (0, 0)),
        )(jnp.zeros((8, 128), jnp.float32))
        jax.block_until_ready(out)
        return True
    except Exception:
        return False


@functools.lru_cache(maxsize=None)
def _vmem_budget():
    """(physical VMEM bytes, usable budget). Fallback keys off device_kind so
    v5e/v6e keep their full 128 MiB instead of inheriting the v7x 64 MiB."""
    cap = 0
    try:
        cap = int(getattr(pltpu.get_tpu_info(), "vmem_capacity_bytes", 0) or 0)
    except Exception:
        cap = 0
    if cap <= 0:
        kind = ""
        try:
            kind = jax.devices()[0].device_kind.lower()
        except Exception:
            pass
        cap = (64 << 20) if "v7" in kind else (128 << 20)
    return cap, (cap * 3) // 4  # headroom for Mosaic-internal scratch


# ---------------------------------------------------------------------------
# Kernels
# ---------------------------------------------------------------------------

def _asym_swiglu_kernel(x_ref, c_ref, o_ref, *, exact_gate, mm_dtype):
    """Resident-C kernel: one (tm, H) row tile against the full (H, H) C."""
    x = x_ref[...]
    xm = x if mm_dtype is None else x.astype(mm_dtype)
    logits = jnp.dot(xm, c_ref[...], preferred_element_type=jnp.float32)
    # exp(-z) overflow to +inf is benign: 1/(1+inf) == 0, the correct gate.
    denom = 1.0 + jnp.exp(-logits)
    if exact_gate:
        # Exact sigmoid for f32 callers (approx reciprocal is ~12-bit rel).
        o_ref[...] = ((1.0 / denom) * x.astype(jnp.float32)).astype(o_ref.dtype)
    else:
        gate = pl.reciprocal(denom, approx=True)
        # Gate in the input dtype: halves VPU element count for bf16.
        o_ref[...] = gate.astype(o_ref.dtype) * x


def _asym_swiglu_ntiled_kernel(x_ref, c_ref, o_ref, *, tn, exact_gate,
                               mm_dtype):
    """Column-tiled kernel: (tm, H) @ (H, tn).  The gating columns are read
    out of the already-resident full-lane LHS block — no second HBM stream of
    x.  tn is a multiple of 128 and divides H, so the slice is an in-bounds,
    lane-aligned free view."""
    j = pl.program_id(1)
    x_full = x_ref[...]
    xm = x_full if mm_dtype is None else x_full.astype(mm_dtype)
    logits = jnp.dot(xm, c_ref[...], preferred_element_type=jnp.float32)

    start = pl.multiple_of(j * tn, 128)
    x_cols = x_ref[:, pl.ds(start, tn)]

    denom = 1.0 + jnp.exp(-logits)
    if exact_gate:
        o_ref[...] = ((1.0 / denom) * x_cols.astype(jnp.float32)).astype(o_ref.dtype)
    else:
        o_ref[...] = pl.reciprocal(denom, approx=True).astype(o_ref.dtype) * x_cols


# ---------------------------------------------------------------------------
# Tiling helpers
# ---------------------------------------------------------------------------

def _pick_row_tile(M, Hx, itemsize, avail_bytes):
    """Largest 256-multiple row tile whose pipelined footprint (double-
    buffered x & out tiles + f32 logits/gate intermediates) fits."""
    def footprint(tm):
        return 4 * tm * Hx * itemsize + 2 * tm * Hx * 4

    tm = 256
    for cand in (1024, 512, 256):
        if footprint(cand) <= avail_bytes:
            tm = cand
            break
    # Keep >= ~8 grid steps for large M: restores prefetch/compute overlap per
    # TensorCore when the "parallel" axis is split across v7x's 2 TCs, and
    # 512-row tiles already sit near the HBM roofline so this costs little.
    if M > 8 * 256:
        tm = min(tm, max(256, _round_up(pl.cdiv(M, 8), 256)))
    return min(tm, _round_up(M, 8))


# ---------------------------------------------------------------------------
# pallas_call builders
# ---------------------------------------------------------------------------

def _resident_call(x2d, C, *, exact_gate, mm_dtype, cap, budget):
    M, Hx = x2d.shape
    itemsize = jnp.dtype(x2d.dtype).itemsize
    c_itemsize = jnp.dtype(C.dtype).itemsize

    single_buf_c = _buffered_supported()
    c_bufs = 1 if single_buf_c else 2
    c_bytes = c_bufs * C.shape[0] * C.shape[1] * c_itemsize

    tm = _pick_row_tile(M, Hx, itemsize, budget - c_bytes)
    grid = (pl.cdiv(M, tm),)
    need = c_bytes + 4 * tm * Hx * itemsize + 2 * tm * Hx * 4 + (2 << 20)
    vmem_limit = int(min(max(need, min(budget, cap)), cap))

    if single_buf_c:
        # Constant index_map: C is DMA'd exactly once; one buffer suffices.
        c_spec = pl.BlockSpec((Hx, Hx), lambda i: (0, 0),
                              pipeline_mode=pl.Buffered(1))
    else:
        c_spec = pl.BlockSpec((Hx, Hx), lambda i: (0, 0))

    kern = functools.partial(_asym_swiglu_kernel, exact_gate=exact_gate,
                             mm_dtype=mm_dtype)
    return pl.pallas_call(
        kern,
        out_shape=jax.ShapeDtypeStruct((M, Hx), x2d.dtype),
        grid_spec=pltpu.PrefetchScalarGridSpec(
            num_scalar_prefetch=0,
            grid=grid,
            in_specs=[
                pl.BlockSpec((tm, Hx), lambda i: (i, 0)),  # streamed row tile
                c_spec,                                    # resident C
            ],
            out_specs=pl.BlockSpec((tm, Hx), lambda i: (i, 0)),
        ),
        compiler_params=pltpu.CompilerParams(
            dimension_semantics=("parallel",),
            vmem_limit_bytes=vmem_limit,
        ),
    )(x2d, C)


def _ntiled_call(x2d, C, *, exact_gate, mm_dtype, cap, budget):
    M, Hp = x2d.shape
    itemsize = jnp.dtype(x2d.dtype).itemsize
    c_itemsize = jnp.dtype(C.dtype).itemsize

    # 256-wide MXUs (v6e/v7x) want tn >= 256.  tn must also divide Hp so the
    # in-kernel gating slice of the LHS block never reads out of bounds; the
    # huge-H shapes that reach this path are multiples of 256 in practice.
    if Hp % 512 == 0:
        tn = 512
    elif Hp % 256 == 0:
        tn = 256
    else:
        tn = 128

    single_buf_lhs = _buffered_supported()
    lhs_bufs = 1 if single_buf_lhs else 2

    def footprint(tm):
        return (lhs_bufs * tm * Hp * itemsize   # full-lane LHS row block
                + 2 * Hp * tn * c_itemsize      # C column tile (double-buf)
                + 2 * tm * tn * itemsize        # out tile (double-buf)
                + 2 * tm * tn * 4)              # f32 logits/gate

    tm = 256
    for cand in (1024, 512, 256):
        if footprint(cand) <= budget:
            tm = cand
            break
    tm = min(tm, _round_up(M, 8))

    grid = (pl.cdiv(M, tm), pl.cdiv(Hp, tn))
    need = footprint(tm) + (2 << 20)
    vmem_limit = int(min(max(need, min(budget, cap)), cap))

    if single_buf_lhs:
        # LHS block index only changes on the outer row axis: single buffer
        # frees tm*Hp*itemsize, letting tm grow and halving C re-reads; the
        # one exposed x DMA per row group amortizes over Hp/tn inner steps.
        lhs_spec = pl.BlockSpec((tm, Hp), lambda i, j: (i, 0),
                                pipeline_mode=pl.Buffered(1))
    else:
        lhs_spec = pl.BlockSpec((tm, Hp), lambda i, j: (i, 0))

    kern = functools.partial(_asym_swiglu_ntiled_kernel, tn=tn,
                             exact_gate=exact_gate, mm_dtype=mm_dtype)
    return pl.pallas_call(
        kern,
        out_shape=jax.ShapeDtypeStruct((M, Hp), x2d.dtype),
        grid_spec=pltpu.PrefetchScalarGridSpec(
            num_scalar_prefetch=0,
            grid=grid,
            in_specs=[
                lhs_spec,                                       # x row block
                pl.BlockSpec((Hp, tn), lambda i, j: (0, j)),    # C column tile
            ],
            out_specs=pl.BlockSpec((tm, tn), lambda i, j: (i, j)),
        ),
        compiler_params=pltpu.CompilerParams(
            dimension_semantics=("parallel", "arbitrary"),
            vmem_limit_bytes=vmem_limit,
        ),
    )(x2d, C)


# ---------------------------------------------------------------------------
# Public wrapper
# ---------------------------------------------------------------------------

def asym_swiglu(x, C, *, force_n_tiling=False, matmul_dtype=None):
    """sigmoid(x @ C) * x, with x: (..., H) and C: (H, H).

    matmul_dtype: optional (e.g. jnp.bfloat16) opt-in cast of the dot operands
    for bf16-native MXUs (v6e/v7x).  Default None preserves input precision.
    """
    orig_shape = x.shape
    H = orig_shape[-1]
    assert C.shape == (H, H), f"C must be ({H},{H}), got {C.shape}"

    x2d = x.reshape(-1, H)
    M = x2d.shape[0]
    itemsize = jnp.dtype(x2d.dtype).itemsize

    exact_gate = jnp.dtype(x.dtype) == jnp.dtype(jnp.float32)
    mm_dtype = None
    Ck = C
    if matmul_dtype is not None and jnp.dtype(C.dtype) != jnp.dtype(matmul_dtype):
        Ck = C.astype(matmul_dtype)       # precision trade-off is caller's call
        mm_dtype = jnp.dtype(matmul_dtype)
    c_itemsize = jnp.dtype(Ck.dtype).itemsize

    cap, budget = _vmem_budget()

    # Resident-C feasibility at the TRUE H (no padding of x / slicing of out:
    # block last dim equal to the full array dim is legal, and masked stores
    # beat two extra full-HBM pad/slice passes when H % 128 != 0).
    c_bufs = 1 if _buffered_supported() else 2
    resident_fits = (c_bufs * H * H * c_itemsize
                     + 4 * 256 * H * itemsize + 2 * 256 * H * 4) <= budget

    if resident_fits and not force_n_tiling:
        out2d = _resident_call(x2d, Ck, exact_gate=exact_gate,
                               mm_dtype=mm_dtype, cap=cap, budget=budget)
        return out2d.reshape(orig_shape)

    # Column-tiled path (huge H, or forced for testing).  It needs a
    # 128-multiple lane extent; pad only in that rare case.  Zero padding is
    # inert (padded x cols are 0, padded C rows/cols are 0 -> padded outputs
    # are sigmoid(0)*0 = 0 and are sliced away).
    Hp = max(128, _round_up(H, 128))
    x2p, Cp = x2d, Ck
    if Hp != H:
        x2p = jnp.pad(x2d, ((0, 0), (0, Hp - H)))
        Cp = jnp.pad(Ck, ((0, Hp - H), (0, Hp - H)))
    out2d = _ntiled_call(x2p, Cp, exact_gate=exact_gate, mm_dtype=mm_dtype,
                         cap=cap, budget=budget)
    if Hp != H:
        out2d = out2d[:, :H]
    return out2d.reshape(orig_shape)


def asym_swiglu_ref(x, C):
    logits = jnp.matmul(x.astype(jnp.float32), C.astype(jnp.float32),
                        precision=jax.lax.Precision.HIGHEST)
    return jax.nn.sigmoid(logits) * x.astype(jnp.float32)


if __name__ == "__main__":
    key = jax.random.PRNGKey(0)
    k_x, k_c, k_x2, k_x3, k_c3 = jax.random.split(key, 5)

    # 1) Small shapes implied by the module: batch=2, seq=8, hidden=32 (f32,
    #    resident path, un-padded small-H blocks, exact sigmoid).
    B, S, H = 2, 8, 32
    x = jax.random.normal(k_x, (B, S, H), dtype=jnp.float32)
    C = jax.random.normal(k_c, (H, H), dtype=jnp.float32) * 0.1
    out = jax.block_until_ready(asym_swiglu(x, C))
    ref = asym_swiglu_ref(x, C)
    assert out.shape == x.shape
    assert jnp.allclose(out, ref, atol=1e-4, rtol=1e-3), "mismatch (resident)"

    # 2) Ragged multi-block row tiling on the resident path.
    M2, H2 = 2500, 128
    x2 = jax.random.normal(k_x2, (M2, H2), dtype=jnp.float32)
    C2 = jax.random.normal(k_c, (H2, H2), dtype=jnp.float32) * 0.1
    out2 = jax.block_until_ready(asym_swiglu(x2, C2))
    ref2 = asym_swiglu_ref(x2, C2)
    assert jnp.allclose(out2, ref2, atol=1e-4, rtol=1e-3), "mismatch (ragged)"

    # 3) Column-tiled path with several column blocks (gating columns sliced
    #    from the resident LHS block).
    M3, H3 = 64, 768
    x3 = jax.random.normal(k_x3, (M3, H3), dtype=jnp.float32)
    C3 = jax.random.normal(k_c3, (H3, H3), dtype=jnp.float32) * 0.05
    out3 = jax.block_until_ready(asym_swiglu(x3, C3, force_n_tiling=True))
    ref3 = asym_swiglu_ref(x3, C3)
    assert jnp.allclose(out3, ref3, atol=1e-4, rtol=1e-3), "mismatch (n-tiled)"

    # 4) bf16 path (approximate-reciprocal sigmoid, bf16 gating multiply).
    xb = x.astype(jnp.bfloat16)
    Cb = C.astype(jnp.bfloat16)
    outb = jax.block_until_ready(asym_swiglu(xb, Cb))
    refb = asym_swiglu_ref(xb, Cb)
    assert jnp.allclose(outb.astype(jnp.float32), refb, atol=3e-2, rtol=3e-2), \
        "mismatch (bf16)"

    print("KERNEL_OK")
</pallas_src>

<mosaic_0001>
module attributes {stable_mosaic.version = 11 : i64} {
  func.func @_probe_copy_kernel(%arg0: i32, %arg1: memref<8x128xf32, #tpu.memory_space<vmem>>, %arg2: memref<8x128xf32, #tpu.memory_space<vmem>>) attributes {dimension_semantics = [#tpu.dimension_semantics<arbitrary>], iteration_bounds = array<i64: 1>, scalar_prefetch = 0 : i64, scratch_operands = 0 : i64, tpu.core_type = #tpu.core_type<tc>, window_params = [{pipeline_mode = #tpu.pipeline_mode<synchronous>, transform_indices = @transform_0, window_bounds = array<i64: 8, 128>}, {pipeline_mode = #tpu.pipeline_mode<synchronous>, transform_indices = @transform_1, window_bounds = array<i64: 8, 128>}]} {
    %c0 = arith.constant 0 : index
    %c0_0 = arith.constant 0 : index
    %0 = vector.load %arg1[%c0, %c0_0] : memref<8x128xf32, #tpu.memory_space<vmem>>, vector<8x128xf32>
    %c0_1 = arith.constant 0 : index
    %c0_2 = arith.constant 0 : index
    %1 = vector.load %arg2[%c0_1, %c0_2] : memref<8x128xf32, #tpu.memory_space<vmem>>, vector<8x128xf32>
    tpu.vector_store %arg2[%c0_1, %c0_2], %0 {strides = array<i32>} : memref<8x128xf32, #tpu.memory_space<vmem>>, vector<8x128xf32>,
    return
  }
  func.func @transform_0(%arg0: i32) -> (i32, i32) {
    %c0_i32 = arith.constant 0 : i32
    %c0_i32_0 = arith.constant 0 : i32
    %c0_i32_1 = arith.constant 0 : i32
    return %c0_i32, %c0_i32_0 : i32, i32
  }
  func.func @transform_1(%arg0: i32) -> (i32, i32) {
    %c0_i32 = arith.constant 0 : i32
    %c0_i32_0 = arith.constant 0 : i32
    %c0_i32_1 = arith.constant 0 : i32
    return %c0_i32, %c0_i32_0 : i32, i32
  }
}

module attributes {stable_mosaic.version = 11 : i64} {
  func.func @_asym_swiglu_kernel(%arg0: i32, %arg1: memref<16x32xf32, #tpu.memory_space<vmem>>, %arg2: memref<32x32xf32, #tpu.memory_space<vmem>>, %arg3: memref<16x32xf32, #tpu.memory_space<vmem>>) attributes {dimension_semantics = [#tpu.dimension_semantics<parallel>], iteration_bounds = array<i64: 1>, scalar_prefetch = 0 : i64, scratch_operands = 0 : i64, tpu.core_type = #tpu.core_type<tc>, window_params = [{transform_indices = @transform_0, window_bounds = array<i64: 16, 32>}, {pipeline_mode = #tpu.pipeline_mode<synchronous>, transform_indices = @transform_1, window_bounds = array<i64: 32, 32>}, {transform_indices = @transform_2, window_bounds = array<i64: 16, 32>}]} {
    %c0 = arith.constant 0 : index
    %c0_0 = arith.constant 0 : index
    %0 = vector.load %arg1[%c0, %c0_0] : memref<16x32xf32, #tpu.memory_space<vmem>>, vector<16x32xf32>
    %c0_1 = arith.constant 0 : index
    %c0_2 = arith.constant 0 : index
    %1 = vector.load %arg2[%c0_1, %c0_2] : memref<32x32xf32, #tpu.memory_space<vmem>>, vector<32x32xf32>
    %cst = arith.constant dense<0.000000e+00> : vector<16x32xf32>
    %2 = tpu.matmul %0, %1, %cst {dimension_numbers = #tpu.dot_dimension_numbers<[1], [0], [0], [1], [0, 0, 1, 1], [], []>} : vector<16x32xf32>, vector<32x32xf32>, vector<16x32xf32> -> vector<16x32xf32>
    %cst_3 = arith.constant 0.000000e+00 : f32
    %3 = vector.broadcast %cst_3 : f32 to vector<16x32xf32>
    %4 = arith.subf %3, %2 : vector<16x32xf32>
    %5 = math.exp %4 : vector<16x32xf32>
    %cst_4 = arith.constant 1.000000e+00 : f32
    %6 = vector.broadcast %cst_4 : f32 to vector<16x32xf32>
    %7 = arith.addf %6, %5 : vector<16x32xf32>
    %cst_5 = arith.constant 1.000000e+00 : f32
    %8 = vector.broadcast %cst_5 : f32 to vector<16x32xf32>
    %9 = arith.divf %8, %7 : vector<16x32xf32>
    %10 = arith.mulf %9, %0 : vector<16x32xf32>
    %c0_6 = arith.constant 0 : index
    %c0_7 = arith.constant 0 : index
    %11 = vector.load %arg3[%c0_6, %c0_7] : memref<16x32xf32, #tpu.memory_space<vmem>>, vector<16x32xf32>
    tpu.vector_store %arg3[%c0_6, %c0_7], %10 {strides = array<i32>} : memref<16x32xf32, #tpu.memory_space<vmem>>, vector<16x32xf32>,
    return
  }
  func.func @transform_0(%arg0: i32) -> (i32, i32) {
    %c0_i32 = arith.constant 0 : i32
    %c0_i32_0 = arith.constant 0 : i32
    return %arg0, %c0_i32 : i32, i32
  }
  func.func @transform_1(%arg0: i32) -> (i32, i32) {
    %c0_i32 = arith.constant 0 : i32
    %c0_i32_0 = arith.constant 0 : i32
    %c0_i32_1 = arith.constant 0 : i32
    return %c0_i32, %c0_i32_0 : i32, i32
  }
  func.func @transform_2(%arg0: i32) -> (i32, i32) {
    %c0_i32 = arith.constant 0 : i32
    %c0_i32_0 = arith.constant 0 : i32
    return %arg0, %c0_i32 : i32, i32
  }
}

</mosaic_0001>

<llo_original>
// kernel: tpu_custom_call.1
$region0: #{tpu_custom_call.1}
  #allocation0 [shape = 'u32[]', space=smem, size = 0x4, offset = 0x4, fixed_abs, tag = 'smem constant byte address 0x4 - core index']
  #allocation1 [shape = 'u32[144,128]{1,0:T(1,128)}', space=vmem, size = 0x12000, scoped, tag = 'internal scratch']
  %s0 = inlined_call_operand.hbm [shape: f32[8,128], index: 0, kind: input, shape index: {}]
  %s1 = inlined_call_operand.hbm [shape: f32[8,128], index: 1, kind: output, shape index: {}]
  %s2 = sld [smem:[#allocation0]]
  $region18: #{tpu_custom_call.1} parent=0
    _
  %s4 = ssub.s32 1, %s2
  %s5 = scalar_select 0, %s4, %s2
  $region1: #{tpu_custom_call.1} parent=0
    #allocation2 [shape = 'u8[4096]{0}', space=vmem, size = 0x1000, scoped, tag = 'input window, operand 0, single buffered']
    #allocation3 [shape = 's32[1]{0}', space=sflag, size = 0x4, scoped, tag = 'scoped memory for tpu_custom_call.1']
    #allocation4 [shape = 's32[1]{0}', space=sflag, size = 0x4, scoped, tag = 'scoped memory for tpu_custom_call.1']
    #allocation5 [shape = 'u8[4096]{0}', space=vmem, size = 0x1000, scoped, tag = 'output window, operand 0, single buffered']
    %6 = vsyncpa [#allocation3], 0
    %7 = vsyncpa [#allocation4], 0
    // Predicated region
    $region2: #{tpu_custom_call.1} parent=1 // pred_check
      _
    $region3: #{tpu_custom_call.1} parent=1 // pred_check_branch
      %9 = sbr.rel (0) target = $region5
    $region4: #{tpu_custom_call.1} parent=1 // pred_region
      %s11 = ssub.s32 128, 128
      %12 = vsyncadd [#allocation3], %s11
      %s14 = sshll.u32 [#allocation2], 4
      %s15 = int_to_ptr.vmem [resolvable:$true] %s14
      %17 = dma.hbm_to_vmem [thread:$0]  %s0, 128, %s15, [#allocation3]
    $region5: #{tpu_custom_call.1} parent=1 // pred_fallthru
      _
    // Predicated region
    $region6: #{tpu_custom_call.1} parent=1 // pred_check
      _
    $region7: #{tpu_custom_call.1} parent=1 // pred_check_branch
      %19 = sbr.rel (0) target = $region9
    $region8: #{tpu_custom_call.1} parent=1 // pred_region
      %20 = dma.done [#allocation3], 128
    $region9: #{tpu_custom_call.1} parent=1 // pred_fallthru
      _
    %v21 = vld [vmem:[#allocation2] sm:$0xff]
    %22 = vst [vmem:[#allocation5] sm:$0xff] %v21
    // Predicated region
    $region10: #{tpu_custom_call.1} parent=1 // pred_check
      _
    $region11: #{tpu_custom_call.1} parent=1 // pred_check_branch
      %24 = sbr.rel (0) target = $region13
    $region12: #{tpu_custom_call.1} parent=1 // pred_region
      %s26 = ssub.s32 128, 128
      %27 = vsyncadd [#allocation4], %s26
      %s29 = sshll.u32 [#allocation5], 4
      %s30 = int_to_ptr.vmem [resolvable:$true] %s29
      %32 = dma.vmem_to_hbm [thread:$0]  %s30, 128, %s1, [#allocation4]
    $region13: #{tpu_custom_call.1} parent=1 // pred_fallthru
      _
    // Predicated region
    $region14: #{tpu_custom_call.1} parent=1 // pred_check
      _
    $region15: #{tpu_custom_call.1} parent=1 // pred_check_branch
      %34 = sbr.rel (0) target = $region17
    $region16: #{tpu_custom_call.1} parent=1 // pred_region
      %35 = dma.done [#allocation4], 128
    $region17: #{tpu_custom_call.1} parent=1 // pred_fallthru
      _
    %36 = vsyncpa [#allocation3], 1
    %37 = vsyncpa [#allocation4], 1

// kernel: tpu_custom_call.1
$region0: #{tpu_custom_call.1}
  #allocation0 [shape = 'u32[]', space=smem, size = 0x4, offset = 0x4, fixed_abs, tag = 'smem constant byte address 0x4 - core index']
  #allocation1 [shape = 'u32[144,128]{1,0:T(1,128)}', space=vmem, size = 0x12000, scoped, tag = 'internal scratch']
  %s0 = inlined_call_operand.hbm [shape: f32[16,32], index: 0, kind: input, shape index: {}]
  %s1 = inlined_call_operand.hbm [shape: f32[32,32], index: 1, kind: input, shape index: {}]
  %s2 = inlined_call_operand.hbm [shape: f32[16,32], index: 2, kind: output, shape index: {}]
  %s3 = sld [smem:[#allocation0]]
  $region26: #{tpu_custom_call.1} parent=0
    _
  %s5 = ssub.s32 1, %s3
  %s6 = scalar_select 0, %s5, %s3
  $region1: #{tpu_custom_call.1} parent=0
    #allocation2 [shape = 'u8[8192]{0}', space=vmem, size = 0x2000, scoped, tag = 'input window, operand 0, single buffered']
    #allocation3 [shape = 's32[1]{0}', space=sflag, size = 0x4, scoped, tag = 'scoped memory for tpu_custom_call.1']
    #allocation4 [shape = 's32[1]{0}', space=sflag, size = 0x4, scoped, tag = 'scoped memory for tpu_custom_call.1']
    #allocation5 [shape = 'u8[16384]{0}', space=vmem, size = 0x4000, scoped, tag = 'input window, operand 1, single buffered']
    #allocation6 [shape = 's32[1]{0}', space=sflag, size = 0x4, scoped, tag = 'scoped memory for tpu_custom_call.1']
    #allocation7 [shape = 'u8[8192]{0}', space=vmem, size = 0x2000, scoped, tag = 'output window, operand 0, single buffered']
    %7 = vsyncpa [#allocation3], 0
    %8 = vsyncpa [#allocation6], 0
    %9 = vsyncpa [#allocation4], 0
    // Predicated region
    $region2: #{tpu_custom_call.1} parent=1 // pred_check
      _
    $region3: #{tpu_custom_call.1} parent=1 // pred_check_branch
      %11 = sbr.rel (0) target = $region5
    $region4: #{tpu_custom_call.1} parent=1 // pred_region
      %s13 = ssub.s32 256, 256
      %14 = vsyncadd [#allocation3], %s13
      %s15 = sshll.u32 [#allocation2], 4
      %s16 = int_to_ptr.vmem [resolvable:$true] %s15
      %21 = dma.hbm_to_vmem [thread:$0]  %s0, 256, %s16, [#allocation3], 128, 128, 8
    $region5: #{tpu_custom_call.1} parent=1 // pred_fallthru
      _
    // Predicated region
    $region6: #{tpu_custom_call.1} parent=1 // pred_check
      _
    $region7: #{tpu_custom_call.1} parent=1 // pred_check_branch
      %23 = sbr.rel (0) target = $region9
    $region8: #{tpu_custom_call.1} parent=1 // pred_region
      %s25 = ssub.s32 512, 512
      %26 = vsyncadd [#allocation6], %s25
      %s27 = sshll.u32 [#allocation5], 4
      %s28 = int_to_ptr.vmem [resolvable:$true] %s27
      %33 = dma.hbm_to_vmem [thread:$0]  %s1, 512, %s28, [#allocation6], 128, 128, 8
    $region9: #{tpu_custom_call.1} parent=1 // pred_fallthru
      _
    // Predicated region
    $region10: #{tpu_custom_call.1} parent=1 // pred_check
      _
    $region11: #{tpu_custom_call.1} parent=1 // pred_check_branch
      %35 = sbr.rel (0) target = $region13
    $region12: #{tpu_custom_call.1} parent=1 // pred_region
      %36 = dma.done [#allocation3], 256
    $region13: #{tpu_custom_call.1} parent=1 // pred_fallthru
      _
    // Predicated region
    $region14: #{tpu_custom_call.1} parent=1 // pred_check
      _
    $region15: #{tpu_custom_call.1} parent=1 // pred_check_branch
      %38 = sbr.rel (0) target = $region17
    $region16: #{tpu_custom_call.1} parent=1 // pred_region
      %39 = dma.done [#allocation6], 512
    $region17: #{tpu_custom_call.1} parent=1 // pred_fallthru
      _
    %v40 = vld [vmem:[#allocation2] sm:$0xff]
    %v41 = vld [vmem:[#allocation2 + $0x8] sm:$0xff]
    %v42 = vld [vmem:[#allocation5] sm:$0xff]
    %v43 = vld [vmem:[#allocation5 + $0x8] sm:$0xff]
    %v44 = vld [vmem:[#allocation5 + $0x10] sm:$0xff]
    %v45 = vld [vmem:[#allocation5 + $0x18] sm:$0xff]
    %vm46 = vcmask 261120
    %v48 = vsel %vm46, %v40, 0
    %v51 = vsel %vm46, %v41, 0
    %53 = vmatprep.subr.mxu0 0.0
    %54 = vmatpush1.msra.mxu0 0.0
    %55 = vmatprep.subr.mxu0 0.0
    %56 = vmatpush1.msra.mxu0 0.0
    %57 = vmatprep.subr.mxu0 0.0
    %58 = vmatpush1.msra.mxu0 0.0
    %59 = vmatprep.subr.mxu0 0.0
    %60 = vmatpush1.msra.mxu0 0.0
    %61 = vmatprep.subr.mxu0 0.0
    %62 = vmatpush1.msra.mxu0 0.0
    %63 = vmatprep.subr.mxu0 0.0
    %64 = vmatpush1.msra.mxu0 0.0
    %65 = vmatprep.subr.mxu0 0.0
    %66 = vmatpush1.msra.mxu0 0.0
    %67 = vmatprep.subr.mxu0 0.0
    %68 = vmatpush1.msra.mxu0 0.0
    %69 = vmatprep.subr.mxu0 0.0
    %70 = vmatpush1.msra.mxu0 0.0
    %71 = vmatprep.subr.mxu0 0.0
    %72 = vmatpush1.msra.mxu0 0.0
    %73 = vmatprep.subr.mxu0 0.0
    %74 = vmatpush1.msra.mxu0 0.0
    %75 = vmatprep.subr.mxu0 0.0
    %76 = vmatpush1.msra.mxu0 0.0
    %77 = vmatprep.subr.mxu0 0.0
    %78 = vmatpush1.msra.mxu0 %v45
    %79 = vmatprep.subr.mxu0 0.0
    %80 = vmatpush1.msra.mxu0 %v44
    %81 = vmatprep.subr.mxu0 0.0
    %82 = vmatpush1.msra.mxu0 %v43
    %83 = vmatprep.subr.mxu0 0.0
    %84 = vmatpush1.msra.mxu0 %v42
    %85 = vmatprep.subr.mxu0 0.0
    %86 = vmatpush2.msra.mxu0 0.0
    %87 = vmatprep.subr.mxu0 0.0
    %88 = vmatpush2.msra.mxu0 0.0
    %89 = vmatprep.subr.mxu0 0.0
    %90 = vmatpush2.msra.mxu0 0.0
    %91 = vmatprep.subr.mxu0 0.0
    %92 = vmatpush2.msra.mxu0 0.0
    %93 = vmatprep.subr.mxu0 0.0
    %94 = vmatpush2.msra.mxu0 0.0
    %95 = vmatprep.subr.mxu0 0.0
    %96 = vmatpush2.msra.mxu0 0.0
    %97 = vmatprep.subr.mxu0 0.0
    %98 = vmatpush2.msra.mxu0 0.0
    %99 = vmatprep.subr.mxu0 0.0
    %100 = vmatpush2.msra.mxu0 0.0
    %101 = vmatprep.subr.mxu0 0.0
    %102 = vmatpush2.msra.mxu0 0.0
    %103 = vmatprep.subr.mxu0 0.0
    %104 = vmatpush2.msra.mxu0 0.0
    %105 = vmatprep.subr.mxu0 0.0
    %106 = vmatpush2.msra.mxu0 0.0
    %107 = vmatprep.subr.mxu0 0.0
    %108 = vmatpush2.msra.mxu0 0.0
    %109 = vmatprep.subr.mxu0 0.0
    %110 = vmatpush2.msra.mxu0 0.0
    %111 = vmatprep.subr.mxu0 0.0
    %112 = vmatpush2.msra.mxu0 0.0
    %113 = vmatprep.subr.mxu0 0.0
    %114 = vmatpush2.msra.mxu0 0.0
    %115 = vmatprep.subr.mxu0 0.0
    %116 = vmatpush2.msra.mxu0 0.0
    %117 = vmatprep.mubr.f32.mxu0 0.0
    %118 = vmatmul.mubr.f32.gmra.mxu0 %v48
    %v119 = vpop.f32.mrf.mxu0
    %v120 = vadd.f32 0.0, %v119
    %v121 = vpop.f32.mrf.mxu0
    %122 = vmatprep.mubr.f32.mxu0 0.0
    %123 = vmatmul.mubr.f32.gmra.mxu0 %v51
    %v124 = vpop.f32.mrf.mxu0
    %v125 = vadd.f32 0.0, %v124
    %v126 = vpop.f32.mrf.mxu0
    %127 = vdwg.mxu0
    %v128 = vsub.f32 0.0, %v120
    %v129 = vsub.f32 0.0, %v125
    %v130 = vmul.f32 %v128, 1.442695
    %v131 = vpow.pop %v130
    %v132 = vmul.f32 %v129, 1.442695
    %v133 = vpow.pop %v132
    %v134 = vadd.f32 %v131, 1.0
    %v135 = vadd.f32 %v133, 1.0
    %v136 = vrcp.pop %v134
    %v137 = vmul.f32 1.0, %v136
    %v138 = vrcp.pop %v135
    %v139 = vmul.f32 1.0, %v138
    %v140 = vmul.f32 %v137, %v40
    %v141 = vmul.f32 %v139, %v41
    %142 = vst.msk [vmem:[#allocation7] sm:$0xff] %vm46, %v140
    %143 = vst.msk [vmem:[#allocation7 + $0x8] sm:$0xff] %vm46, %v141
    // Predicated region
    $region18: #{tpu_custom_call.1} parent=1 // pred_check
      _
    $region19: #{tpu_custom_call.1} parent=1 // pred_check_branch
      %145 = sbr.rel (0) target = $region21
    $region20: #{tpu_custom_call.1} parent=1 // pred_region
      %s147 = ssub.s32 256, 256
      %148 = vsyncadd [#allocation4], %s147
      %s149 = sshll.u32 [#allocation7], 4
      %s150 = int_to_ptr.vmem [resolvable:$true] %s149
      %155 = dma.vmem_to_hbm [thread:$0]  %s150, 256, %s2, [#allocation4], 128, 128, 8
    $region21: #{tpu_custom_call.1} parent=1 // pred_fallthru
      _
    // Predicated region
    $region22: #{tpu_custom_call.1} parent=1 // pred_check
      _
    $region23: #{tpu_custom_call.1} parent=1 // pred_check_branch
      %157 = sbr.rel (0) target = $region25
    $region24: #{tpu_custom_call.1} parent=1 // pred_region
      %158 = dma.done [#allocation4], 256
    $region25: #{tpu_custom_call.1} parent=1 // pred_fallthru
      _
    %159 = vsyncpa [#allocation3], 1
    %160 = vsyncpa [#allocation6], 1
    %161 = vsyncpa [#allocation4], 1

</llo_original>
